<compile_context>
chip_gen: v6e
topology: v6e:2x2x1
jax: 0.10.0
libtpu: 0.0.40
codegen_flags: <defaults>
</compile_context>

<pallas_src>
import functools
import math

import jax
import jax.numpy as jnp
from jax.experimental import pallas as pl
from jax.experimental.pallas import tpu as pltpu


# ---------------------------------------------------------------------------
# Init-time PE table (identical to the PyTorch registered buffer)
# ---------------------------------------------------------------------------
def _build_pe_table(d_model: int, max_len: int = 5000) -> jnp.ndarray:
    """Returns pe with shape [1, max_len, d_model], float32 (even d_model)."""
    assert d_model % 2 == 0, "PositionalEncoding requires an even d_model"
    position = jnp.arange(0, max_len, dtype=jnp.float32)[:, None]            # [L, 1]
    div_term = jnp.exp(
        jnp.arange(0, d_model, 2, dtype=jnp.float32) * (-math.log(10000.0) / d_model)
    )                                                                         # [D/2]
    angles = position * div_term                                              # [L, D/2]
    pe = jnp.stack([jnp.sin(angles), jnp.cos(angles)], axis=-1)               # [L, D/2, 2]
    pe = pe.reshape(max_len, d_model)                                         # even=sin, odd=cos
    return pe[None, :, :]                                                     # [1, L, D]


def make_pe_flat(d_model: int, max_len: int, dtype=jnp.float32) -> jnp.ndarray:
    """Init-time buffer: flattened [1, max_len*d_model] in the compute dtype."""
    pe = _build_pe_table(d_model, max_len)
    return pe.reshape(1, max_len * d_model).astype(dtype)


# ---------------------------------------------------------------------------
# Kernels
# ---------------------------------------------------------------------------
def _add_kernel(x_ref, pe_ref, o_ref):
    # pe_ref block is (1, tf) (windowed) or (1, n) when there is a single flat
    # tile; broadcast over the batch rows on the VPU.
    o_ref[...] = x_ref[...] + pe_ref[...]


def _add_resident_kernel(x_ref, pe_ref, o_ref, *, tf: int):
    # PE is resident: one (1, n) VMEM buffer DMA'd once for the whole grid.
    # tf divides n and tf % 128 == 0, so the window is lane-aligned and never
    # reads past the valid PE region.
    off = pl.multiple_of(pl.program_id(0) * tf, 128)
    o_ref[...] = x_ref[...] + pe_ref[:, pl.ds(off, tf)]


# ---------------------------------------------------------------------------
# Tiling helpers
# ---------------------------------------------------------------------------
def _round_up(x: int, m: int) -> int:
    return ((x + m - 1) // m) * m


def _largest_aligned_divisor(n: int, cap: int, align: int = 128):
    """Largest d <= cap with d % align == 0 and n % d == 0, else None."""
    if cap < align or n % align != 0:
        return None
    m = n // align
    best = None
    i = 1
    while i * i <= m:
        if m % i == 0:
            for d in (i, m // i):
                c = d * align
                if c <= cap and (best is None or c > best):
                    best = c
        i += 1
    return best


# ---------------------------------------------------------------------------
# Forward
# ---------------------------------------------------------------------------
def positional_encoding_forward(x: jnp.ndarray, pe_flat: jnp.ndarray,
                                *, donate_x: bool = False) -> jnp.ndarray:
    """x: [B, S, D]; pe_flat: [1, max_len*D] (same dtype as x) -> [B, S, D].

    Set donate_x=True only if the caller no longer needs x (the output then
    aliases x's HBM buffer).
    """
    B, S, D = x.shape
    n = S * D
    assert pe_flat.shape[1] >= n, "seq_len exceeds max_len of the PE buffer"
    assert pe_flat.dtype == x.dtype, "PE buffer must be pre-cast to x.dtype at init"

    itemsize = jnp.dtype(x.dtype).itemsize
    sub = 32 // itemsize              # sublane tile rows: 8 (f32) / 16 (bf16) / 32 (i8)

    try:
        kind = jax.devices()[0].device_kind.lower()
    except Exception:
        kind = ""
    is_v7 = "v7" in kind

    # Per-generation VMEM budgets (for all padded, double-buffered blocks) and
    # explicit scoped-VMEM limit.  v7x: 64 MiB physical / 32 MiB scoped per TC.
    if is_v7:
        budget, vmem_limit = 24 * (1 << 20), 32 * (1 << 20)
    else:  # v5e / v6e: 128 MiB physical
        budget, vmem_limit = 48 * (1 << 20), 64 * (1 << 20)

    TARGET_TILE_BYTES = 4 * (1 << 20)   # per padded x tile (amortizes ~0.35us/step)
    MIN_TF = 512                        # keep per-row DMA chunks >= 2 KiB (f32)

    x2 = x.reshape(B, n)                # trailing-dim merge: free, lane-dense layout

    # Batch tile: whole batch when small; otherwise 64-row tiles (a multiple of
    # every sublane granularity) so very large B cannot blow the VMEM budget.
    tb = B if B <= 64 else 64
    pad_tb = _round_up(tb, sub)         # what the (sub,128) tiling really costs

    def pick_tf(per_tf_bytes: int, reserved_bytes: int) -> int:
        usable = max(budget - reserved_bytes, per_tf_bytes * MIN_TF)
        cap = min(usable // per_tf_bytes,
                  max(MIN_TF, TARGET_TILE_BYTES // (pad_tb * itemsize)))
        if cap >= n:
            return n                                   # single flat tile
        d = _largest_aligned_divisor(n, cap)
        if d is not None and d >= min(MIN_TF, n):
            return d                                   # divides n: no ragged tile
        return max(128, (cap // 128) * 128)            # ragged last tile (masked)

    # Resident-PE plan: one (1, n) buffer pads to `sub` rows and is DMA'd once.
    resident_pe_bytes = sub * _round_up(n, 128) * itemsize
    resident_ok = resident_pe_bytes <= 4 * (1 << 20)
    tf = pick_tf(2 * (2 * pad_tb) * itemsize, resident_pe_bytes) if resident_ok else 0
    pe_resident = resident_ok and tf > 0 and n % tf == 0
    if not pe_resident:
        # Windowed PE: the (1, tf) block pads to `sub` rows and is double
        # buffered, so it is part of the per-tf budget (review item #1).
        tf = pick_tf(2 * (2 * pad_tb + sub) * itemsize, 0)

    num_f = pl.cdiv(n, tf)
    num_b = pl.cdiv(B, tb)
    grid = (num_f, num_b)   # flat axis OUTER: a windowed PE tile is DMA'd once
                            # per flat tile and reused across all batch tiles.

    x_spec = pl.BlockSpec((tb, tf), lambda j, i: (i, j))
    out_spec = pl.BlockSpec((tb, tf), lambda j, i: (i, j))

    if pe_resident:
        pe_in = pe_flat[:, :n]                                    # (1, n), held once in VMEM
        pe_spec = pl.BlockSpec((1, n), lambda j, i: (0, 0))
        kernel = (_add_kernel if num_f == 1
                  else functools.partial(_add_resident_kernel, tf=tf))
    else:
        need = num_f * tf
        pe_in = pe_flat if pe_flat.shape[1] >= need else jnp.pad(
            pe_flat, ((0, 0), (0, need - pe_flat.shape[1])))      # keep last window in-bounds
        pe_spec = pl.BlockSpec((1, tf), lambda j, i: (0, j))
        kernel = _add_kernel

    # Grid semantics: both axes are independent.  On v7x explicitly shard the
    # longer axis across the two TensorCores (plain "parallel" does not).
    sem = ["parallel", "parallel"]
    if is_v7:
        core_par = getattr(pltpu, "CORE_PARALLEL", None)
        par = getattr(pltpu, "PARALLEL", "parallel")
        if core_par is not None:
            sem = [par, par]
            sem[0 if num_f >= num_b else 1] = core_par

    cost = pl.CostEstimate(
        flops=B * n,
        transcendentals=0,
        bytes_accessed=(2 * B * n + n) * itemsize,
    )

    out2 = pl.pallas_call(
        kernel,
        out_shape=jax.ShapeDtypeStruct((B, n), x.dtype),
        grid_spec=pltpu.PrefetchScalarGridSpec(
            num_scalar_prefetch=0,
            grid=grid,
            in_specs=[x_spec, pe_spec],
            out_specs=out_spec,
        ),
        compiler_params=pltpu.CompilerParams(
            dimension_semantics=tuple(sem),
            vmem_limit_bytes=vmem_limit,
        ),
        cost_estimate=cost,
        input_output_aliases=({0: 0} if donate_x else {}),
    )(x2, pe_in)

    return out2.reshape(B, S, D)


if __name__ == "__main__":
    # Small shapes consistent with forward: [batch, seq_len, d_model]
    B, S, D = 2, 8, 32
    MAX_LEN = 64  # module default is 5000; only the first seq_len rows are used

    key = jax.random.PRNGKey(0)
    x = jax.random.normal(key, (B, S, D), dtype=jnp.float32)

    # "init": build the PE buffer once, flattened + cast (hoisted out of forward)
    pe_table = _build_pe_table(d_model=D, max_len=MAX_LEN)      # [1, L, D] f32 (reference)
    pe_flat = make_pe_flat(d_model=D, max_len=MAX_LEN, dtype=x.dtype)

    out = positional_encoding_forward(x, pe_flat)               # donate_x=False: x reused below
    out = jax.block_until_ready(out)

    # Reference check in plain JAX (module semantics: x + pe[:, :seq_len, :])
    ref = x + pe_table[:, :S, :]
    assert out.shape == (B, S, D)
    assert jnp.allclose(out, ref, atol=1e-6), "mismatch vs reference"

    print("KERNEL_OK")
</pallas_src>

<mosaic_0001>
module attributes {stable_mosaic.version = 11 : i64} {
  func.func @_add_kernel(%arg0: i32, %arg1: i32, %arg2: memref<2x256xf32, #tpu.memory_space<vmem>>, %arg3: memref<1x256xf32, #tpu.memory_space<vmem>>, %arg4: memref<2x256xf32, #tpu.memory_space<vmem>>) attributes {dimension_semantics = [#tpu.dimension_semantics<parallel>, #tpu.dimension_semantics<parallel>], iteration_bounds = array<i64: 1, 1>, scalar_prefetch = 0 : i64, scratch_operands = 0 : i64, tpu.core_type = #tpu.core_type<tc>, window_params = [{transform_indices = @transform_0, window_bounds = array<i64: 2, 256>}, {pipeline_mode = #tpu.pipeline_mode<synchronous>, transform_indices = @transform_1, window_bounds = array<i64: 1, 256>}, {transform_indices = @transform_2, window_bounds = array<i64: 2, 256>}]} {
    %c0 = arith.constant 0 : index
    %c0_0 = arith.constant 0 : index
    %0 = vector.load %arg2[%c0, %c0_0] : memref<2x256xf32, #tpu.memory_space<vmem>>, vector<2x256xf32>
    %c0_1 = arith.constant 0 : index
    %c0_2 = arith.constant 0 : index
    %1 = vector.load %arg3[%c0_1, %c0_2] : memref<1x256xf32, #tpu.memory_space<vmem>>, vector<1x256xf32>
    %2 = vector.broadcast %1 : vector<1x256xf32> to vector<2x256xf32>
    %3 = arith.addf %0, %2 : vector<2x256xf32>
    %c0_3 = arith.constant 0 : index
    %c0_4 = arith.constant 0 : index
    %4 = vector.load %arg4[%c0_3, %c0_4] : memref<2x256xf32, #tpu.memory_space<vmem>>, vector<2x256xf32>
    tpu.vector_store %arg4[%c0_3, %c0_4], %3 {strides = array<i32>} : memref<2x256xf32, #tpu.memory_space<vmem>>, vector<2x256xf32>,
    return
  }
  func.func @transform_0(%arg0: i32, %arg1: i32) -> (i32, i32) {
    %c0_i32 = arith.constant 0 : i32
    return %arg1, %arg0 : i32, i32
  }
  func.func @transform_1(%arg0: i32, %arg1: i32) -> (i32, i32) {
    %c0_i32 = arith.constant 0 : i32
    %c0_i32_0 = arith.constant 0 : i32
    %c0_i32_1 = arith.constant 0 : i32
    return %c0_i32, %c0_i32_0 : i32, i32
  }
  func.func @transform_2(%arg0: i32, %arg1: i32) -> (i32, i32) {
    %c0_i32 = arith.constant 0 : i32
    return %arg1, %arg0 : i32, i32
  }
}

</mosaic_0001>

<llo_original>
// kernel: tpu_custom_call.1
$region0: #{tpu_custom_call.1}
  #allocation0 [shape = 'u32[]', space=smem, size = 0x4, offset = 0x4, fixed_abs, tag = 'smem constant byte address 0x4 - core index']
  #allocation1 [shape = 'u32[144,128]{1,0:T(1,128)}', space=vmem, size = 0x12000, scoped, tag = 'internal scratch']
  %s0 = inlined_call_operand.hbm [shape: f32[2,256], index: 0, kind: input, shape index: {}]
  %s1 = inlined_call_operand.hbm [shape: f32[1,256], index: 1, kind: input, shape index: {}]
  %s2 = inlined_call_operand.hbm [shape: f32[2,256], index: 2, kind: output, shape index: {}]
  %s3 = sld [smem:[#allocation0]]
  $region26: #{tpu_custom_call.1} parent=0
    _
  %s5 = ssub.s32 1, %s3
  %s6 = scalar_select 0, %s5, %s3
  $region1: #{tpu_custom_call.1} parent=0
    #allocation2 [shape = 'u8[2048]{0}', space=vmem, size = 0x800, scoped, tag = 'input window, operand 0, single buffered']
    #allocation3 [shape = 's32[1]{0}', space=sflag, size = 0x4, scoped, tag = 'scoped memory for tpu_custom_call.1']
    #allocation4 [shape = 's32[1]{0}', space=sflag, size = 0x4, scoped, tag = 'scoped memory for tpu_custom_call.1']
    #allocation5 [shape = 'u8[1024]{0}', space=vmem, size = 0x400, scoped, tag = 'input window, operand 1, single buffered']
    #allocation6 [shape = 's32[1]{0}', space=sflag, size = 0x4, scoped, tag = 'scoped memory for tpu_custom_call.1']
    #allocation7 [shape = 'u8[2048]{0}', space=vmem, size = 0x800, scoped, tag = 'output window, operand 0, single buffered']
    %7 = vsyncpa [#allocation3], 0
    %8 = vsyncpa [#allocation6], 0
    %9 = vsyncpa [#allocation4], 0
    // Predicated region
    $region2: #{tpu_custom_call.1} parent=1 // pred_check
      _
    $region3: #{tpu_custom_call.1} parent=1 // pred_check_branch
      %11 = sbr.rel (0) target = $region5
    $region4: #{tpu_custom_call.1} parent=1 // pred_region
      %s13 = ssub.s32 64, 64
      %14 = vsyncadd [#allocation3], %s13
      %s16 = sshll.u32 [#allocation2], 4
      %s17 = int_to_ptr.vmem [resolvable:$true] %s16
      %19 = dma.hbm_to_vmem [thread:$0]  %s0, 64, %s17, [#allocation3]
    $region5: #{tpu_custom_call.1} parent=1 // pred_fallthru
      _
    // Predicated region
    $region6: #{tpu_custom_call.1} parent=1 // pred_check
      _
    $region7: #{tpu_custom_call.1} parent=1 // pred_check_branch
      %21 = sbr.rel (0) target = $region9
    $region8: #{tpu_custom_call.1} parent=1 // pred_region
      %s23 = ssub.s32 32, 32
      %24 = vsyncadd [#allocation6], %s23
      %s26 = sshll.u32 [#allocation5], 4
      %s27 = int_to_ptr.vmem [resolvable:$true] %s26
      %29 = dma.hbm_to_vmem [thread:$0]  %s1, 32, %s27, [#allocation6]
    $region9: #{tpu_custom_call.1} parent=1 // pred_fallthru
      _
    // Predicated region
    $region10: #{tpu_custom_call.1} parent=1 // pred_check
      _
    $region11: #{tpu_custom_call.1} parent=1 // pred_check_branch
      %31 = sbr.rel (0) target = $region13
    $region12: #{tpu_custom_call.1} parent=1 // pred_region
      %32 = dma.done [#allocation3], 64
    $region13: #{tpu_custom_call.1} parent=1 // pred_fallthru
      _
    // Predicated region
    $region14: #{tpu_custom_call.1} parent=1 // pred_check
      _
    $region15: #{tpu_custom_call.1} parent=1 // pred_check_branch
      %34 = sbr.rel (0) target = $region17
    $region16: #{tpu_custom_call.1} parent=1 // pred_region
      %35 = dma.done [#allocation6], 32
    $region17: #{tpu_custom_call.1} parent=1 // pred_fallthru
      _
    %v36 = vld [vmem:[#allocation2] sm:$0xf]
    %v37 = vld [vmem:[#allocation5] sm:$0x3]
    %v39 = vlaneseq
    %v40 = vshrl.u32 %v39, 7
    %v41 = vsub.s32 0, %v40
    %v42 = vrot.slane %v37, %v41
    %v43 = vlaneseq
    %v44 = vshrl.u32 %v43, 7
    %v45 = vsub.s32 1, %v44
    %v46 = vrot.slane %v37, %v45
    %v47 = vcombine.low %v42, %v46
    %v49 = vunpack.c.l.s4 1983009808
    %v50 = vunpack.c.0.s8 %v49
    %v51 = vlaneseq
    %v52 = vshrl.u32 %v51, 7
    %v53 = vsub.s32 %v50, %v52
    %v54 = vrot.slane %v47, %v53
    %v56 = vadd.f32 %v36, %v54
    %57 = vst [vmem:[#allocation7] sm:$0xf] %v56
    // Predicated region
    $region18: #{tpu_custom_call.1} parent=1 // pred_check
      _
    $region19: #{tpu_custom_call.1} parent=1 // pred_check_branch
      %59 = sbr.rel (0) target = $region21
    $region20: #{tpu_custom_call.1} parent=1 // pred_region
      %s61 = ssub.s32 64, 64
      %62 = vsyncadd [#allocation4], %s61
      %s64 = sshll.u32 [#allocation7], 4
      %s65 = int_to_ptr.vmem [resolvable:$true] %s64
      %67 = dma.vmem_to_hbm [thread:$0]  %s65, 64, %s2, [#allocation4]
    $region21: #{tpu_custom_call.1} parent=1 // pred_fallthru
      _
    // Predicated region
    $region22: #{tpu_custom_call.1} parent=1 // pred_check
      _
    $region23: #{tpu_custom_call.1} parent=1 // pred_check_branch
      %69 = sbr.rel (0) target = $region25
    $region24: #{tpu_custom_call.1} parent=1 // pred_region
      %70 = dma.done [#allocation4], 64
    $region25: #{tpu_custom_call.1} parent=1 // pred_fallthru
      _
    %71 = vsyncpa [#allocation3], 1
    %72 = vsyncpa [#allocation6], 1
    %73 = vsyncpa [#allocation4], 1

</llo_original>
